<compile_context>
chip_gen: v7x
topology: tpu7x:2x2x1
jax: 0.10.0
libtpu: 0.0.40
codegen_flags: <defaults>
</compile_context>

<pallas_src>
import functools
import math

import jax
import jax.numpy as jnp
from jax.experimental import pallas as pl
from jax.experimental.pallas import tpu as pltpu


# ----------------------------------------------------------------------------
# In-kernel math helpers (operate on traced values; elementary ops only)
# ----------------------------------------------------------------------------
def _layer_norm(x, g, b, eps=1e-5):
    mu = jnp.mean(x, axis=-1, keepdims=True)
    c = x - mu
    var = jnp.mean(c * c, axis=-1, keepdims=True)
    return c * jax.lax.rsqrt(var + eps) * g + b


def _softmax_lastdim(s):
    s = s - jnp.max(s, axis=-1, keepdims=True)
    p = jnp.exp(s)
    return p * pl.reciprocal(jnp.sum(p, axis=-1, keepdims=True), approx=True)


def _erf(v):
    # Abramowitz & Stegun 7.1.26 (|err| < 1.5e-7); elementary ops only so the
    # exact-form (erf) GELU can be fused inside the Mosaic kernel.
    a1, a2, a3, a4, a5 = (0.254829592, -0.284496736, 1.421413741,
                          -1.453152027, 1.061405429)
    p = 0.3275911
    av = jnp.abs(v)
    t = 1.0 / (1.0 + p * av)
    poly = ((((a5 * t + a4) * t + a3) * t + a2) * t + a1) * t
    y = 1.0 - poly * jnp.exp(-av * av)
    return jnp.where(v < 0.0, -y, y)


def _gelu(x):
    return 0.5 * x * (1.0 + _erf(x * (1.0 / math.sqrt(2.0))))


def _mish(y):
    sp = jnp.maximum(y, 0.0) + jnp.log(1.0 + jnp.exp(-jnp.abs(y)))
    return y * jnp.tanh(sp)


def _attention(q, k, v, scale):
    # q:(H,Tq,dh)  k,v:(H,Tk,dh) -> (H,Tq,dh); heads batched on leading axis.
    s = jnp.einsum("hqd,hkd->hqk", q, k,
                   preferred_element_type=jnp.float32) * scale
    p = _softmax_lastdim(s)
    return jnp.einsum("hqk,hkd->hqd", p, v, preferred_element_type=jnp.float32)


# ----------------------------------------------------------------------------
# Pallas kernels
# ----------------------------------------------------------------------------
def _cond_encoder_kernel(time_ref, cond_ref, w_obs, b_obs, pos_ref,
                         w1, b1, w2, b2, o_ref, tok):
    """[time_tok ; cond@W+b] + cond_pos -> Linear -> Mish -> Linear (fused)."""
    tok[0:1, :] = time_ref[0] + pos_ref[0, 0:1, :]
    obs = jnp.dot(cond_ref[0], w_obs[...],
                  preferred_element_type=jnp.float32) + b_obs[...]
    tok[1:, :] = obs + pos_ref[0, 1:, :]
    x = tok[...]
    h = _mish(jnp.dot(x, w1[...], preferred_element_type=jnp.float32) + b1[...])
    o_ref[0] = (jnp.dot(h, w2[...], preferred_element_type=jnp.float32)
                + b2[...]).astype(o_ref.dtype)


def _input_embed_kernel(x_ref, w_ref, b_ref, pos_ref, o_ref):
    """input_emb(sample) + pos_emb, fused."""
    o_ref[0] = (jnp.dot(x_ref[0], w_ref[...], preferred_element_type=jnp.float32)
                + b_ref[...] + pos_ref[0]).astype(o_ref.dtype)


def _decoder_layer_kernel(x_ref, mem_ref,
                          ln1_g, ln1_b, sa_wqkv, sa_bqkv, sa_wo, sa_bo,
                          ln2_g, ln2_b, ca_wq, ca_bq, ca_wkv, ca_bkv,
                          ca_wo, ca_bo, ln3_g, ln3_b,
                          ff_w1, ff_b1, ff_w2, ff_b2,
                          o_ref, *, n_head, head_dim):
    """One pre-norm TransformerDecoder layer, fully fused (eval, no masks)."""
    H, dh = n_head, head_dim
    x = x_ref[0]            # (T, E)
    mem = mem_ref[0]        # (Tc, E)
    T, E = x.shape
    Tc = mem.shape[0]
    scale = 1.0 / math.sqrt(dh)

    # ---- self-attention block (fused QKV projection, batched heads) ----
    h = _layer_norm(x, ln1_g[...], ln1_b[...])
    hb = jnp.broadcast_to(h[None], (H, T, E))
    qkv = jnp.einsum("hte,hef->htf", hb, sa_wqkv[...],
                     preferred_element_type=jnp.float32) + sa_bqkv[...]
    q = qkv[:, :, 0:dh]
    k = qkv[:, :, dh:2 * dh]
    v = qkv[:, :, 2 * dh:3 * dh]
    a = _attention(q, k, v, scale)                               # (H, T, dh)
    proj = jnp.einsum("htd,hde->hte", a, sa_wo[...],
                      preferred_element_type=jnp.float32)
    x = x + jnp.sum(proj, axis=0) + sa_bo[...]

    # ---- cross-attention block (fused KV projection from memory) ----
    h = _layer_norm(x, ln2_g[...], ln2_b[...])
    hqb = jnp.broadcast_to(h[None], (H, T, E))
    memb = jnp.broadcast_to(mem[None], (H, Tc, E))
    q = jnp.einsum("hte,hed->htd", hqb, ca_wq[...],
                   preferred_element_type=jnp.float32) + ca_bq[...]
    kv = jnp.einsum("hte,hef->htf", memb, ca_wkv[...],
                    preferred_element_type=jnp.float32) + ca_bkv[...]
    k = kv[:, :, 0:dh]
    v = kv[:, :, dh:2 * dh]
    a = _attention(q, k, v, scale)
    proj = jnp.einsum("htd,hde->hte", a, ca_wo[...],
                      preferred_element_type=jnp.float32)
    x = x + jnp.sum(proj, axis=0) + ca_bo[...]

    # ---- feed-forward block (exact erf-GELU fused in-kernel) ----
    h = _layer_norm(x, ln3_g[...], ln3_b[...])
    f = jnp.dot(h, ff_w1[...], preferred_element_type=jnp.float32) + ff_b1[...]
    f = _gelu(f)
    x = x + jnp.dot(f, ff_w2[...], preferred_element_type=jnp.float32) + ff_b2[...]

    o_ref[0] = x.astype(o_ref.dtype)


def _head_kernel(x_ref, g_ref, b_ref, w_ref, bh_ref, o_ref):
    """Final LayerNorm + output head, fused."""
    h = _layer_norm(x_ref[0], g_ref[...], b_ref[...])
    o_ref[0] = (jnp.dot(h, w_ref[...], preferred_element_type=jnp.float32)
                + bh_ref[...]).astype(o_ref.dtype)


_LAYER_KEYS = ("ln1_g", "ln1_b", "sa_wqkv", "sa_bqkv", "sa_wo", "sa_bo",
               "ln2_g", "ln2_b", "ca_wq", "ca_bq", "ca_wkv", "ca_bkv",
               "ca_wo", "ca_bo", "ln3_g", "ln3_b",
               "ff_w1", "ff_b1", "ff_w2", "ff_b2")


# ----------------------------------------------------------------------------
# Parameter initialization (deterministic, mirrors _init_weights shapes;
# attention weights stored head-major: wq[h] == Wq[h*dh:(h+1)*dh, :].T etc.)
# ----------------------------------------------------------------------------
def init_params(key, cfg):
    E = cfg["n_emb"]
    H = cfg["n_head"]
    dh = E // H
    keys = iter(jax.random.split(key, 256))

    def nrm(shape):
        return 0.02 * jax.random.normal(next(keys), shape, jnp.float32)

    p = {
        "input_emb_w": nrm((cfg["input_dim"], E)),
        "input_emb_b": jnp.zeros((1, E), jnp.float32),
        "cond_obs_emb_w": nrm((cfg["cond_dim"], E)),
        "cond_obs_emb_b": jnp.zeros((1, E), jnp.float32),
        "pos_emb": nrm((1, cfg["T"], E)),
        "cond_pos_emb": nrm((1, cfg["T_cond"], E)),
        "enc_w1": nrm((E, 4 * E)), "enc_b1": jnp.zeros((1, 4 * E), jnp.float32),
        "enc_w2": nrm((4 * E, E)), "enc_b2": jnp.zeros((1, E), jnp.float32),
        "ln_f_g": jnp.ones((1, E), jnp.float32),
        "ln_f_b": jnp.zeros((1, E), jnp.float32),
        "head_w": nrm((E, cfg["output_dim"])),
        "head_b": jnp.zeros((1, cfg["output_dim"]), jnp.float32),
    }
    layers = []
    for _ in range(cfg["n_layer"]):
        d = {
            "ln1_g": jnp.ones((1, E), jnp.float32),
            "ln1_b": jnp.zeros((1, E), jnp.float32),
            "sa_wqkv": nrm((H, E, 3 * dh)),
            "sa_bqkv": jnp.zeros((H, 1, 3 * dh), jnp.float32),
            "sa_wo": nrm((H, dh, E)),
            "sa_bo": jnp.zeros((1, E), jnp.float32),
            "ln2_g": jnp.ones((1, E), jnp.float32),
            "ln2_b": jnp.zeros((1, E), jnp.float32),
            "ca_wq": nrm((H, E, dh)),
            "ca_bq": jnp.zeros((H, 1, dh), jnp.float32),
            "ca_wkv": nrm((H, E, 2 * dh)),
            "ca_bkv": jnp.zeros((H, 1, 2 * dh), jnp.float32),
            "ca_wo": nrm((H, dh, E)),
            "ca_bo": jnp.zeros((1, E), jnp.float32),
            "ln3_g": jnp.ones((1, E), jnp.float32),
            "ln3_b": jnp.zeros((1, E), jnp.float32),
            "ff_w1": nrm((E, 4 * E)),
            "ff_b1": jnp.zeros((1, 4 * E), jnp.float32),
            "ff_w2": nrm((4 * E, E)),
            "ff_b2": jnp.zeros((1, E), jnp.float32),
        }
        layers.append(d)
    p["layers"] = layers
    return p


# ----------------------------------------------------------------------------
# Forward pass (eval mode: dropout == identity)
# ----------------------------------------------------------------------------
def forward(params, sample, timestep, cond, cfg):
    B = sample.shape[0]
    E = cfg["n_emb"]
    H = cfg["n_head"]
    dh = E // H
    T = cfg["T"]
    Tc = cfg["T_cond"]
    Di = cfg["input_dim"]
    Dc = cfg["cond_dim"]
    Do = cfg["output_dim"]
    To = cfg["n_obs_steps"]

    cp = pltpu.CompilerParams(dimension_semantics=("parallel",))

    def bspec(shape):       # batched array: one batch element per grid step
        nd = len(shape)
        return pl.BlockSpec((1,) + tuple(shape[1:]),
                            lambda b, _nd=nd: (b,) + (0,) * (_nd - 1))

    def wspec(shape):       # shared weight: whole array, resident across steps
        nd = len(shape)
        return pl.BlockSpec(tuple(shape), lambda b, _nd=nd: (0,) * _nd)

    # --- sinusoidal diffusion-step embedding (tiny scalar glue, plain JAX) ---
    t = jnp.broadcast_to(jnp.asarray(timestep, jnp.float32).reshape(-1), (B,))
    half = E // 2
    freqs = jnp.exp(jnp.arange(half, dtype=jnp.float32)
                    * (-math.log(10000.0) / (half - 1)))
    ang = t[:, None] * freqs[None, :]
    time_tok = jnp.concatenate([jnp.sin(ang), jnp.cos(ang)], axis=-1)[:, None, :]

    # --- fused condition encoder ---
    memory = pl.pallas_call(
        _cond_encoder_kernel,
        out_shape=jax.ShapeDtypeStruct((B, Tc, E), jnp.float32),
        grid=(B,),
        in_specs=[bspec((B, 1, E)), bspec((B, To, Dc)),
                  wspec((Dc, E)), wspec((1, E)), wspec((1, Tc, E)),
                  wspec((E, 4 * E)), wspec((1, 4 * E)),
                  wspec((4 * E, E)), wspec((1, E))],
        out_specs=bspec((B, Tc, E)),
        scratch_shapes=[pltpu.VMEM((Tc, E), jnp.float32)],
        compiler_params=cp,
    )(time_tok, cond, params["cond_obs_emb_w"], params["cond_obs_emb_b"],
      params["cond_pos_emb"], params["enc_w1"], params["enc_b1"],
      params["enc_w2"], params["enc_b2"])

    # --- fused input embedding + positional embedding ---
    x = pl.pallas_call(
        _input_embed_kernel,
        out_shape=jax.ShapeDtypeStruct((B, T, E), jnp.float32),
        grid=(B,),
        in_specs=[bspec((B, T, Di)), wspec((Di, E)), wspec((1, E)),
                  wspec((1, T, E))],
        out_specs=bspec((B, T, E)),
        compiler_params=cp,
    )(sample, params["input_emb_w"], params["input_emb_b"], params["pos_emb"])

    # --- decoder: one fused pallas_call per pre-norm TransformerDecoder layer
    layer_wshapes = [
        (1, E), (1, E),
        (H, E, 3 * dh), (H, 1, 3 * dh), (H, dh, E), (1, E),
        (1, E), (1, E),
        (H, E, dh), (H, 1, dh), (H, E, 2 * dh), (H, 1, 2 * dh),
        (H, dh, E), (1, E),
        (1, E), (1, E),
        (E, 4 * E), (1, 4 * E), (4 * E, E), (1, E),
    ]
    layer_call = pl.pallas_call(
        functools.partial(_decoder_layer_kernel, n_head=H, head_dim=dh),
        out_shape=jax.ShapeDtypeStruct((B, T, E), jnp.float32),
        grid=(B,),
        in_specs=[bspec((B, T, E)), bspec((B, Tc, E))]
                 + [wspec(s) for s in layer_wshapes],
        out_specs=bspec((B, T, E)),
        compiler_params=cp,
    )
    # TODO(synk): for real-size configs, add cross-call weight prefetch (P10)
    # and bf16 weights/activations instead of re-streaming f32 per layer call.
    for lp in params["layers"]:
        x = layer_call(x, memory, *[lp[k] for k in _LAYER_KEYS])

    # --- fused final LayerNorm + output head ---
    out = pl.pallas_call(
        _head_kernel,
        out_shape=jax.ShapeDtypeStruct((B, T, Do), jnp.float32),
        grid=(B,),
        in_specs=[bspec((B, T, E)), wspec((1, E)), wspec((1, E)),
                  wspec((E, Do)), wspec((1, Do))],
        out_specs=bspec((B, T, Do)),
        compiler_params=cp,
    )(x, params["ln_f_g"], params["ln_f_b"], params["head_w"], params["head_b"])
    return out  # (B, T, output_dim)


# ----------------------------------------------------------------------------
if __name__ == "__main__":
    cfg = dict(
        input_dim=8, output_dim=8, horizon=8, n_obs_steps=4, cond_dim=6,
        n_layer=2, n_head=4, n_emb=32,
    )
    cfg["T"] = cfg["horizon"]
    cfg["T_cond"] = 1 + cfg["n_obs_steps"]   # time token + obs tokens

    key = jax.random.PRNGKey(0)
    kp, ks, kc = jax.random.split(key, 3)
    params = init_params(kp, cfg)

    B = 2
    sample = jax.random.normal(ks, (B, cfg["horizon"], cfg["input_dim"]), jnp.float32)
    cond = jax.random.normal(kc, (B, cfg["n_obs_steps"], cfg["cond_dim"]), jnp.float32)
    timestep = jnp.array(10, dtype=jnp.int32)   # scalar diffusion step

    out = forward(params, sample, timestep, cond, cfg)
    out = jax.block_until_ready(out)
    assert out.shape == (B, cfg["horizon"], cfg["output_dim"])
    assert bool(jnp.all(jnp.isfinite(out)))
    print("KERNEL_OK")
</pallas_src>

<mosaic_0001>
module attributes {stable_mosaic.version = 11 : i64} {
  func.func @_cond_encoder_kernel(%arg0: i32, %arg1: memref<1x1x32xf32, #tpu.memory_space<vmem>>, %arg2: memref<1x4x6xf32, #tpu.memory_space<vmem>>, %arg3: memref<6x32xf32, #tpu.memory_space<vmem>>, %arg4: memref<1x32xf32, #tpu.memory_space<vmem>>, %arg5: memref<1x5x32xf32, #tpu.memory_space<vmem>>, %arg6: memref<32x128xf32, #tpu.memory_space<vmem>>, %arg7: memref<1x128xf32, #tpu.memory_space<vmem>>, %arg8: memref<128x32xf32, #tpu.memory_space<vmem>>, %arg9: memref<1x32xf32, #tpu.memory_space<vmem>>, %arg10: memref<1x5x32xf32, #tpu.memory_space<vmem>>, %arg11: memref<5x32xf32, #tpu.memory_space<vmem>>) attributes {dimension_semantics = [#tpu.dimension_semantics<parallel>], iteration_bounds = array<i64: 2>, scalar_prefetch = 0 : i64, scratch_operands = 1 : i64, tpu.core_type = #tpu.core_type<tc>, window_params = [{transform_indices = @transform_0, window_bounds = array<i64: 1, 1, 32>}, {transform_indices = @transform_1, window_bounds = array<i64: 1, 4, 6>}, {pipeline_mode = #tpu.pipeline_mode<synchronous>, transform_indices = @transform_2, window_bounds = array<i64: 6, 32>}, {pipeline_mode = #tpu.pipeline_mode<synchronous>, transform_indices = @transform_3, window_bounds = array<i64: 1, 32>}, {pipeline_mode = #tpu.pipeline_mode<synchronous>, transform_indices = @transform_4, window_bounds = array<i64: 1, 5, 32>}, {pipeline_mode = #tpu.pipeline_mode<synchronous>, transform_indices = @transform_5, window_bounds = array<i64: 32, 128>}, {pipeline_mode = #tpu.pipeline_mode<synchronous>, transform_indices = @transform_6, window_bounds = array<i64: 1, 128>}, {pipeline_mode = #tpu.pipeline_mode<synchronous>, transform_indices = @transform_7, window_bounds = array<i64: 128, 32>}, {pipeline_mode = #tpu.pipeline_mode<synchronous>, transform_indices = @transform_8, window_bounds = array<i64: 1, 32>}, {transform_indices = @transform_9, window_bounds = array<i64: 1, 5, 32>}]} {
    %c0 = arith.constant 0 : index
    %c0_0 = arith.constant 0 : index
    %c0_1 = arith.constant 0 : index
    %0 = vector.load %arg1[%c0, %c0_0, %c0_1] : memref<1x1x32xf32, #tpu.memory_space<vmem>>, vector<1x1x32xf32>
    %1 = vector.shape_cast %0 : vector<1x1x32xf32> to vector<1x32xf32>
    %c0_2 = arith.constant 0 : index
    %c0_3 = arith.constant 0 : index
    %c0_4 = arith.constant 0 : index
    %2 = vector.load %arg5[%c0_2, %c0_3, %c0_4] : memref<1x5x32xf32, #tpu.memory_space<vmem>>, vector<1x1x32xf32>
    %3 = vector.shape_cast %2 : vector<1x1x32xf32> to vector<1x32xf32>
    %4 = arith.addf %1, %3 : vector<1x32xf32>
    %c0_5 = arith.constant 0 : index
    %c0_6 = arith.constant 0 : index
    %5 = vector.load %arg11[%c0_5, %c0_6] : memref<5x32xf32, #tpu.memory_space<vmem>>, vector<1x32xf32>
    tpu.vector_store %arg11[%c0_5, %c0_6], %4 {strides = array<i32>} : memref<5x32xf32, #tpu.memory_space<vmem>>, vector<1x32xf32>,
    %c0_7 = arith.constant 0 : index
    %c0_8 = arith.constant 0 : index
    %c0_9 = arith.constant 0 : index
    %6 = vector.load %arg2[%c0_7, %c0_8, %c0_9] : memref<1x4x6xf32, #tpu.memory_space<vmem>>, vector<1x4x6xf32>
    %7 = vector.shape_cast %6 : vector<1x4x6xf32> to vector<4x6xf32>
    %c0_10 = arith.constant 0 : index
    %c0_11 = arith.constant 0 : index
    %8 = vector.load %arg3[%c0_10, %c0_11] : memref<6x32xf32, #tpu.memory_space<vmem>>, vector<6x32xf32>
    %cst = arith.constant dense<0.000000e+00> : vector<4x32xf32>
    %9 = tpu.matmul %7, %8, %cst {dimension_numbers = #tpu.dot_dimension_numbers<[1], [0], [0], [1], [0, 0, 1, 1], [], []>} : vector<4x6xf32>, vector<6x32xf32>, vector<4x32xf32> -> vector<4x32xf32>
    %c0_12 = arith.constant 0 : index
    %c0_13 = arith.constant 0 : index
    %10 = vector.load %arg4[%c0_12, %c0_13] : memref<1x32xf32, #tpu.memory_space<vmem>>, vector<1x32xf32>
    %11 = vector.broadcast %10 : vector<1x32xf32> to vector<4x32xf32>
    %12 = arith.addf %9, %11 : vector<4x32xf32>
    %c0_14 = arith.constant 0 : index
    %c1 = arith.constant 1 : index
    %c0_15 = arith.constant 0 : index
    %13 = vector.load %arg5[%c0_14, %c1, %c0_15] : memref<1x5x32xf32, #tpu.memory_space<vmem>>, vector<1x4x32xf32>
    %14 = vector.shape_cast %13 : vector<1x4x32xf32> to vector<4x32xf32>
    %15 = arith.addf %12, %14 : vector<4x32xf32>
    %c1_16 = arith.constant 1 : index
    %c0_17 = arith.constant 0 : index
    %16 = vector.load %arg11[%c1_16, %c0_17] : memref<5x32xf32, #tpu.memory_space<vmem>>, vector<4x32xf32>
    tpu.vector_store %arg11[%c1_16, %c0_17], %15 {strides = array<i32>} : memref<5x32xf32, #tpu.memory_space<vmem>>, vector<4x32xf32>,
    %c0_18 = arith.constant 0 : index
    %c0_19 = arith.constant 0 : index
    %17 = vector.load %arg11[%c0_18, %c0_19] : memref<5x32xf32, #tpu.memory_space<vmem>>, vector<5x32xf32>
    %c0_20 = arith.constant 0 : index
    %c0_21 = arith.constant 0 : index
    %18 = vector.load %arg6[%c0_20, %c0_21] : memref<32x128xf32, #tpu.memory_space<vmem>>, vector<32x128xf32>
    %cst_22 = arith.constant dense<0.000000e+00> : vector<5x128xf32>
    %19 = tpu.matmul %17, %18, %cst_22 {dimension_numbers = #tpu.dot_dimension_numbers<[1], [0], [0], [1], [0, 0, 1, 1], [], []>} : vector<5x32xf32>, vector<32x128xf32>, vector<5x128xf32> -> vector<5x128xf32>
    %c0_23 = arith.constant 0 : index
    %c0_24 = arith.constant 0 : index
    %20 = vector.load %arg7[%c0_23, %c0_24] : memref<1x128xf32, #tpu.memory_space<vmem>>, vector<1x128xf32>
    %21 = vector.broadcast %20 : vector<1x128xf32> to vector<5x128xf32>
    %22 = arith.addf %19, %21 : vector<5x128xf32>
    %cst_25 = arith.constant 0.000000e+00 : f32
    %23 = vector.broadcast %cst_25 : f32 to vector<5x128xf32>
    %24 = arith.maximumf %22, %23 : vector<5x128xf32>
    %25 = math.absf %22 : vector<5x128xf32>
    %cst_26 = arith.constant 0.000000e+00 : f32
    %26 = vector.broadcast %cst_26 : f32 to vector<5x128xf32>
    %27 = arith.subf %26, %25 : vector<5x128xf32>
    %28 = math.exp %27 : vector<5x128xf32>
    %cst_27 = arith.constant 1.000000e+00 : f32
    %29 = vector.broadcast %cst_27 : f32 to vector<5x128xf32>
    %30 = arith.addf %29, %28 : vector<5x128xf32>
    %31 = math.log %30 : vector<5x128xf32>
    %32 = arith.addf %24, %31 : vector<5x128xf32>
    %33 = math.tanh %32 : vector<5x128xf32>
    %34 = arith.mulf %22, %33 : vector<5x128xf32>
    %c0_28 = arith.constant 0 : index
    %c0_29 = arith.constant 0 : index
    %35 = vector.load %arg8[%c0_28, %c0_29] : memref<128x32xf32, #tpu.memory_space<vmem>>, vector<128x32xf32>
    %cst_30 = arith.constant dense<0.000000e+00> : vector<5x32xf32>
    %36 = tpu.matmul %34, %35, %cst_30 {dimension_numbers = #tpu.dot_dimension_numbers<[1], [0], [0], [1], [0, 0, 1, 1], [], []>} : vector<5x128xf32>, vector<128x32xf32>, vector<5x32xf32> -> vector<5x32xf32>
    %c0_31 = arith.constant 0 : index
    %c0_32 = arith.constant 0 : index
    %37 = vector.load %arg9[%c0_31, %c0_32] : memref<1x32xf32, #tpu.memory_space<vmem>>, vector<1x32xf32>
    %38 = vector.broadcast %37 : vector<1x32xf32> to vector<5x32xf32>
    %39 = arith.addf %36, %38 : vector<5x32xf32>
    %c0_33 = arith.constant 0 : index
    %c0_34 = arith.constant 0 : index
    %c0_35 = arith.constant 0 : index
    %40 = vector.load %arg10[%c0_33, %c0_34, %c0_35] : memref<1x5x32xf32, #tpu.memory_space<vmem>>, vector<1x5x32xf32>
    %41 = vector.shape_cast %40 : vector<1x5x32xf32> to vector<5x32xf32>
    %42 = vector.shape_cast %39 : vector<5x32xf32> to vector<1x5x32xf32>
    tpu.vector_store %arg10[%c0_33, %c0_34, %c0_35], %42 {strides = array<i32>} : memref<1x5x32xf32, #tpu.memory_space<vmem>>, vector<1x5x32xf32>,
    return
  }
  func.func @transform_0(%arg0: i32) -> (i32, i32, i32) {
    %c0_i32 = arith.constant 0 : i32
    %c0_i32_0 = arith.constant 0 : i32
    %c0_i32_1 = arith.constant 0 : i32
    return %arg0, %c0_i32, %c0_i32_0 : i32, i32, i32
  }
  func.func @transform_1(%arg0: i32) -> (i32, i32, i32) {
    %c0_i32 = arith.constant 0 : i32
    %c0_i32_0 = arith.constant 0 : i32
    %c0_i32_1 = arith.constant 0 : i32
    return %arg0, %c0_i32, %c0_i32_0 : i32, i32, i32
  }
  func.func @transform_2(%arg0: i32) -> (i32, i32) {
    %c0_i32 = arith.constant 0 : i32
    %c0_i32_0 = arith.constant 0 : i32
    %c0_i32_1 = arith.constant 0 : i32
    return %c0_i32, %c0_i32_0 : i32, i32
  }
  func.func @transform_3(%arg0: i32) -> (i32, i32) {
    %c0_i32 = arith.constant 0 : i32
    %c0_i32_0 = arith.constant 0 : i32
    %c0_i32_1 = arith.constant 0 : i32
    return %c0_i32, %c0_i32_0 : i32, i32
  }
  func.func @transform_4(%arg0: i32) -> (i32, i32, i32) {
    %c0_i32 = arith.constant 0 : i32
    %c0_i32_0 = arith.constant 0 : i32
    %c0_i32_1 = arith.constant 0 : i32
    %c0_i32_2 = arith.constant 0 : i32
    return %c0_i32, %c0_i32_0, %c0_i32_1 : i32, i32, i32
  }
  func.func @transform_5(%arg0: i32) -> (i32, i32) {
    %c0_i32 = arith.constant 0 : i32
    %c0_i32_0 = arith.constant 0 : i32
    %c0_i32_1 = arith.constant 0 : i32
    return %c0_i32, %c0_i32_0 : i32, i32
  }
  func.func @transform_6(%arg0: i32) -> (i32, i32) {
    %c0_i32 = arith.constant 0 : i32
    %c0_i32_0 = arith.constant 0 : i32
    %c0_i32_1 = arith.constant 0 : i32
    return %c0_i32, %c0_i32_0 : i32, i32
  }
  func.func @transform_7(%arg0: i32) -> (i32, i32) {
    %c0_i32 = arith.constant 0 : i32
    %c0_i32_0 = arith.constant 0 : i32
    %c0_i32_1 = arith.constant 0 : i32
    return %c0_i32, %c0_i32_0 : i32, i32
  }
  func.func @transform_8(%arg0: i32) -> (i32, i32) {
    %c0_i32 = arith.constant 0 : i32
    %c0_i32_0 = arith.constant 0 : i32
    %c0_i32_1 = arith.constant 0 : i32
    return %c0_i32, %c0_i32_0 : i32, i32
  }
  func.func @transform_9(%arg0: i32) -> (i32, i32, i32) {
    %c0_i32 = arith.constant 0 : i32
    %c0_i32_0 = arith.constant 0 : i32
    %c0_i32_1 = arith.constant 0 : i32
    return %arg0, %c0_i32, %c0_i32_0 : i32, i32, i32
  }
}

</mosaic_0001>

<llo_original>
// kernel: tpu_custom_call.1
$region0: #{tpu_custom_call.1}
  #allocation0 [shape = 'u32[]', space=smem, size = 0x4, offset = 0x4, fixed_abs, tag = 'smem constant byte address 0x4 - core index']
  #allocation1 [shape = 'u32[144,128]{1,0:T(1,128)}', space=vmem, size = 0x12000, scoped, tag = 'internal scratch']
  #allocation2 [shape = 'f32[5,32]{1,0:T(8,128)}', space=vmem, size = 0x1000, scoped, tag = 'scratch operand']
  %s0 = inlined_call_operand.vmem [shape: f32[2,1,32], index: 0, kind: input, shape index: {}]
  %s1 = inlined_call_operand.vmem [shape: f32[2,4,6], index: 1, kind: input, shape index: {}]
  %s2 = inlined_call_operand.vmem [shape: f32[6,32], index: 2, kind: input, shape index: {}]
  %s3 = inlined_call_operand.vmem [shape: f32[1,32], index: 3, kind: input, shape index: {}]
  %s4 = inlined_call_operand.vmem [shape: f32[1,5,32], index: 4, kind: input, shape index: {}]
  %s5 = inlined_call_operand.vmem [shape: f32[32,128], index: 5, kind: input, shape index: {}]
  %s6 = inlined_call_operand.vmem [shape: f32[1,128], index: 6, kind: input, shape index: {}]
  %s7 = inlined_call_operand.vmem [shape: f32[128,32], index: 7, kind: input, shape index: {}]
  %s8 = inlined_call_operand.vmem [shape: f32[1,32], index: 8, kind: input, shape index: {}]
  %s9 = inlined_call_operand.vmem [shape: f32[2,5,32], index: 9, kind: output, shape index: {}]
  %s10 = sld [smem:[#allocation0]]
  $region69: #{tpu_custom_call.1} parent=0
    _
  %s12 = ssub.s32 1, %s10
  %s13 = scalar_select 0, %s12, %s10
  loop: start=0, step=1, limit=4
  $region2: #{tpu_custom_call.1} parent=0 // loop_pre_header
    _
  $region3: #{tpu_custom_call.1} parent=0 // loop_header
    %s15 = sphi 0, %s19
    %p16 = scmp.ge.s32.totalorder %s15, 4
    %s25 = sphi 0, %s27
    %s28 = sphi 0, %s25
    %s29 = sphi 0, %s28
    %s45 = sphi 0, %s29
    %s51 = sphi 0, %s53
    %s54 = sphi 0, %s51
    %s55 = sphi 0, %s54
    %s71 = sphi 0, %s55
    %s75 = sphi 0, %s75
    %s77 = sphi 0, %s75
    %s78 = sphi 0, %s77
    %s92 = sphi 0, %s78
    %s96 = sphi 0, %s96
    %s98 = sphi 0, %s96
    %s99 = sphi 0, %s98
    %s113 = sphi 0, %s99
    %s117 = sphi 0, %s117
    %s119 = sphi 0, %s117
    %s120 = sphi 0, %s119
    %s134 = sphi 0, %s120
    %s138 = sphi 0, %s138
    %s140 = sphi 0, %s138
    %s141 = sphi 0, %s140
    %s155 = sphi 0, %s141
    %s159 = sphi 0, %s159
    %s161 = sphi 0, %s159
    %s162 = sphi 0, %s161
    %s176 = sphi 0, %s162
    %s180 = sphi 0, %s180
    %s182 = sphi 0, %s180
    %s183 = sphi 0, %s182
    %s197 = sphi 0, %s183
    %s201 = sphi 0, %s201
    %s203 = sphi 0, %s201
    %s204 = sphi 0, %s203
    %s218 = sphi 0, %s204
    %s224 = sphi 0, %s226
    %s227 = sphi 0, %s224
    %s228 = sphi 0, %s227
    %s244 = sphi 0, %s228
  $region4: #{tpu_custom_call.1} parent=0 // loop_header_branch
    %18 = sbr.rel (%p16) target = $region8
  $region5: #{tpu_custom_call.1} parent=0 // loop_body
    %s20 = ssub.s32 %s15, 1
    %s21 = ssub.s32 %s15, 2
    %s22 = sadd.s32 %s15, 1
    %s23 = ssub.s32 %s15, %s22
    %p24 = scmp.eq.s32.totalorder %s23, 0
    %s26 = sadd.s32 %s25, 1
    %s27 = scalar_select %p24, %s25, %s26
    %p30 = pneg %p24
    %p31 = scmp.eq.s32.totalorder %s15, 1
    %p32 = por %p30, %p31
    %p33 = scmp.ne.s32.totalorder %s25, %s28
    %p34 = scmp.eq.s32.totalorder %s15, 0
    %p35 = por %p33, %p34
    %p36 = scmp.ne.s32.totalorder %s25, %s28
    %p37 = scmp.eq.s32.totalorder %s20, 1
    %p38 = por %p36, %p37
    %p39 = scmp.ne.s32.totalorder %s28, %s29
    %p40 = scmp.eq.s32.totalorder %s20, 0
    %p41 = por %p39, %p40
    %p42 = scmp.ne.s32.totalorder %s28, %s29
    %p43 = scmp.eq.s32.totalorder %s21, 1
    %p44 = por %p42, %p43
    %p46 = scmp.ne.s32.totalorder %s29, %s45
    %p47 = scmp.eq.s32.totalorder %s21, 0
    %p48 = por %p46, %p47
    %s49 = ssub.s32 %s15, %s22
    %p50 = scmp.eq.s32.totalorder %s49, 0
    %s52 = sadd.s32 %s51, 1
    %s53 = scalar_select %p50, %s51, %s52
    %p56 = pneg %p50
    %p57 = scmp.eq.s32.totalorder %s15, 1
    %p58 = por %p56, %p57
    %p59 = scmp.ne.s32.totalorder %s51, %s54
    %p60 = scmp.eq.s32.totalorder %s15, 0
    %p61 = por %p59, %p60
    %p62 = scmp.ne.s32.totalorder %s51, %s54
    %p63 = scmp.eq.s32.totalorder %s20, 1
    %p64 = por %p62, %p63
    %p65 = scmp.ne.s32.totalorder %s54, %s55
    %p66 = scmp.eq.s32.totalorder %s20, 0
    %p67 = por %p65, %p66
    %p68 = scmp.ne.s32.totalorder %s54, %s55
    %p69 = scmp.eq.s32.totalorder %s21, 1
    %p70 = por %p68, %p69
    %p72 = scmp.ne.s32.totalorder %s55, %s71
    %p73 = scmp.eq.s32.totalorder %s21, 0
    %p74 = por %p72, %p73
    %s76 = sadd.s32 %s75, 1
    %p79 = scmp.eq.s32.totalorder %s15, 1
    %p80 = scmp.ne.s32.totalorder %s75, %s77
    %p81 = scmp.eq.s32.totalorder %s15, 0
    %p82 = por %p80, %p81
    %p83 = scmp.ne.s32.totalorder %s75, %s77
    %p84 = scmp.eq.s32.totalorder %s20, 1
    %p85 = por %p83, %p84
    %p86 = scmp.ne.s32.totalorder %s77, %s78
    %p87 = scmp.eq.s32.totalorder %s20, 0
    %p88 = por %p86, %p87
    %p89 = scmp.ne.s32.totalorder %s77, %s78
    %p90 = scmp.eq.s32.totalorder %s21, 1
    %p91 = por %p89, %p90
    %p93 = scmp.ne.s32.totalorder %s78, %s92
    %p94 = scmp.eq.s32.totalorder %s21, 0
    %p95 = por %p93, %p94
    %s97 = sadd.s32 %s96, 1
    %p100 = scmp.eq.s32.totalorder %s15, 1
    %p101 = scmp.ne.s32.totalorder %s96, %s98
    %p102 = scmp.eq.s32.totalorder %s15, 0
    %p103 = por %p101, %p102
    %p104 = scmp.ne.s32.totalorder %s96, %s98
    %p105 = scmp.eq.s32.totalorder %s20, 1
    %p106 = por %p104, %p105
    %p107 = scmp.ne.s32.totalorder %s98, %s99
    %p108 = scmp.eq.s32.totalorder %s20, 0
    %p109 = por %p107, %p108
    %p110 = scmp.ne.s32.totalorder %s98, %s99
    %p111 = scmp.eq.s32.totalorder %s21, 1
    %p112 = por %p110, %p111
    %p114 = scmp.ne.s32.totalorder %s99, %s113
    %p115 = scmp.eq.s32.totalorder %s21, 0
    %p116 = por %p114, %p115
    %s118 = sadd.s32 %s117, 1
    %p121 = scmp.eq.s32.totalorder %s15, 1
    %p122 = scmp.ne.s32.totalorder %s117, %s119
    %p123 = scmp.eq.s32.totalorder %s15, 0
    %p124 = por %p122, %p123
    %p125 = scmp.ne.s32.totalorder %s117, %s119
    %p126 = scmp.eq.s32.totalorder %s20, 1
    %p127 = por %p125, %p126
    %p128 = scmp.ne.s32.totalorder %s119, %s120
    %p129 = scmp.eq.s32.totalorder %s20, 0
    %p130 = por %p128, %p129
    %p131 = scmp.ne.s32.totalorder %s119, %s120
    %p132 = scmp.eq.s32.totalorder %s21, 1
    %p133 = por %p131, %p132
    %p135 = scmp.ne.s32.totalorder %s120, %s134
    %p136 = scmp.eq.s32.totalorder %s21, 0
    %p137 = por %p135, %p136
    %s139 = sadd.s32 %s138, 1
    %p142 = scmp.eq.s32.totalorder %s15, 1
    %p143 = scmp.ne.s32.totalorder %s138, %s140
    %p144 = scmp.eq.s32.totalorder %s15, 0
    %p145 = por %p143, %p144
    %p146 = scmp.ne.s32.totalorder %s138, %s140
    %p147 = scmp.eq.s32.totalorder %s20, 1
    %p148 = por %p146, %p147
    %p149 = scmp.ne.s32.totalorder %s140, %s141
    %p150 = scmp.eq.s32.totalorder %s20, 0
    %p151 = por %p149, %p150
    %p152 = scmp.ne.s32.totalorder %s140, %s141
    %p153 = scmp.eq.s32.totalorder %s21, 1
    %p154 = por %p152, %p153
    %p156 = scmp.ne.s32.totalorder %s141, %s155
    %p157 = scmp.eq.s32.totalorder %s21, 0
    %p158 = por %p156, %p157
    %s160 = sadd.s32 %s159, 1
    %p163 = scmp.eq.s32.totalorder %s15, 1
    %p164 = scmp.ne.s32.totalorder %s159, %s161
    %p165 = scmp.eq.s32.totalorder %s15, 0
    %p166 = por %p164, %p165
    %p167 = scmp.ne.s32.totalorder %s159, %s161
    %p168 = scmp.eq.s32.totalorder %s20, 1
    %p169 = por %p167, %p168
    %p170 = scmp.ne.s32.totalorder %s161, %s162
    %p171 = scmp.eq.s32.totalorder %s20, 0
    %p172 = por %p170, %p171
    %p173 = scmp.ne.s32.totalorder %s161, %s162
    %p174 = scmp.eq.s32.totalorder %s21, 1
    %p175 = por %p173, %p174
    %p177 = scmp.ne.s32.totalorder %s162, %s176
    %p178 = scmp.eq.s32.totalorder %s21, 0
    %p179 = por %p177, %p178
    %s181 = sadd.s32 %s180, 1
    %p184 = scmp.eq.s32.totalorder %s15, 1
    %p185 = scmp.ne.s32.totalorder %s180, %s182
    %p186 = scmp.eq.s32.totalorder %s15, 0
    %p187 = por %p185, %p186
    %p188 = scmp.ne.s32.totalorder %s180, %s182
    %p189 = scmp.eq.s32.totalorder %s20, 1
    %p190 = por %p188, %p189
    %p191 = scmp.ne.s32.totalorder %s182, %s183
    %p192 = scmp.eq.s32.totalorder %s20, 0
    %p193 = por %p191, %p192
    %p194 = scmp.ne.s32.totalorder %s182, %s183
    %p195 = scmp.eq.s32.totalorder %s21, 1
    %p196 = por %p194, %p195
    %p198 = scmp.ne.s32.totalorder %s183, %s197
    %p199 = scmp.eq.s32.totalorder %s21, 0
    %p200 = por %p198, %p199
    %s202 = sadd.s32 %s201, 1
    %p205 = scmp.eq.s32.totalorder %s15, 1
    %p206 = scmp.ne.s32.totalorder %s201, %s203
    %p207 = scmp.eq.s32.totalorder %s15, 0
    %p208 = por %p206, %p207
    %p209 = scmp.ne.s32.totalorder %s201, %s203
    %p210 = scmp.eq.s32.totalorder %s20, 1
    %p211 = por %p209, %p210
    %p212 = scmp.ne.s32.totalorder %s203, %s204
    %p213 = scmp.eq.s32.totalorder %s20, 0
    %p214 = por %p212, %p213
    %p215 = scmp.ne.s32.totalorder %s203, %s204
    %p216 = scmp.eq.s32.totalorder %s21, 1
    %p217 = por %p215, %p216
    %p219 = scmp.ne.s32.totalorder %s204, %s218
    %p220 = scmp.eq.s32.totalorder %s21, 0
    %p221 = por %p219, %p220
    %s222 = ssub.s32 %s15, %s22
    %p223 = scmp.eq.s32.totalorder %s222, 0
    %s225 = sadd.s32 %s224, 1
    %s226 = scalar_select %p223, %s224, %s225
    %p229 = pneg %p223
    %p230 = scmp.eq.s32.totalorder %s15, 1
    %p231 = por %p229, %p230
    %p232 = scmp.ne.s32.totalorder %s224, %s227
    %p233 = scmp.eq.s32.totalorder %s15, 0
    %p234 = por %p232, %p233
    %p235 = scmp.ne.s32.totalorder %s224, %s227
    %p236 = scmp.eq.s32.totalorder %s20, 1
    %p237 = por %p235, %p236
    %p238 = scmp.ne.s32.totalorder %s227, %s228
    %p239 = scmp.eq.s32.totalorder %s20, 0
    %p240 = por %p238, %p239
    %p241 = scmp.ne.s32.totalorder %s227, %s228
    %p242 = scmp.eq.s32.totalorder %s21, 1
    %p243 = por %p241, %p242
    %p245 = scmp.ne.s32.totalorder %s228, %s244
    %p246 = scmp.eq.s32.totalorder %s21, 0
    %p247 = por %p245, %p246
    %p248 = scmp.le.s32.totalorder 1, %s15
    %p249 = scmp.lt.s32.totalorder %s15, 3
    %p250 = pnand %p248, %p249
    %p251 = pneg %p250
    // Predicated region
    $region9: #{tpu_custom_call.1} parent=5 // pred_check
      _
    $region10: #{tpu_custom_call.1} parent=5 // pred_check_branch
      %253 = sbr.rel (%p250) target = $region12
    $region11: #{tpu_custom_call.1} parent=5 // pred_region
      %s254 = ssub.s32 %s15, 1
      // Predicated region
      $region13: #{tpu_custom_call.1} parent=11 // pred_check
        %p255 = pneg %p88
      $region14: #{tpu_custom_call.1} parent=11 // pred_check_branch
        %257 = sbr.rel (%p255) target = $region16
      $region15: #{tpu_custom_call.1} parent=11 // pred_region
        _
      $region16: #{tpu_custom_call.1} parent=11 // pred_fallthru
        _
      // Predicated region
      $region17: #{tpu_custom_call.1} parent=11 // pred_check
        %p258 = pneg %p109
      $region18: #{tpu_custom_call.1} parent=11 // pred_check_branch
        %260 = sbr.rel (%p258) target = $region20
      $region19: #{tpu_custom_call.1} parent=11 // pred_region
        _
      $region20: #{tpu_custom_call.1} parent=11 // pred_fallthru
        _
      // Predicated region
      $region21: #{tpu_custom_call.1} parent=11 // pred_check
        %p261 = pneg %p130
      $region22: #{tpu_custom_call.1} parent=11 // pred_check_branch
        %263 = sbr.rel (%p261) target = $region24
      $region23: #{tpu_custom_call.1} parent=11 // pred_region
        _
      $region24: #{tpu_custom_call.1} parent=11 // pred_fallthru
        _
      // Predicated region
      $region25: #{tpu_custom_call.1} parent=11 // pred_check
        %p264 = pneg %p151
      $region26: #{tpu_custom_call.1} parent=11 // pred_check_branch
        %266 = sbr.rel (%p264) target = $region28
      $region27: #{tpu_custom_call.1} parent=11 // pred_region
        _
      $region28: #{tpu_custom_call.1} parent=11 // pred_fallthru
        _
      // Predicated region
      $region29: #{tpu_custom_call.1} parent=11 // pred_check
        %p267 = pneg %p172
      $region30: #{tpu_custom_call.1} parent=11 // pred_check_branch
        %269 = sbr.rel (%p267) target = $region32
      $region31: #{tpu_custom_call.1} parent=11 // pred_region
        _
      $region32: #{tpu_custom_call.1} parent=11 // pred_fallthru
        _
      // Predicated region
      $region33: #{tpu_custom_call.1} parent=11 // pred_check
        %p270 = pneg %p193
      $region34: #{tpu_custom_call.1} parent=11 // pred_check_branch
        %272 = sbr.rel (%p270) target = $region36
      $region35: #{tpu_custom_call.1} parent=11 // pred_region
        _
      $region36: #{tpu_custom_call.1} parent=11 // pred_fallthru
        _
      // Predicated region
      $region37: #{tpu_custom_call.1} parent=11 // pred_check
        %p273 = pneg %p214
      $region38: #{tpu_custom_call.1} parent=11 // pred_check_branch
        %275 = sbr.rel (%p273) target = $region40
      $region39: #{tpu_custom_call.1} parent=11 // pred_region
        _
      $region40: #{tpu_custom_call.1} parent=11 // pred_fallthru
        _
    $region12: #{tpu_custom_call.1} parent=5 // pred_fallthru
      _
    %p276 = scmp.lt.s32.totalorder %s15, 2
    // Predicated region
    $region41: #{tpu_custom_call.1} parent=5 // pred_check
      %p277 = pneg %p276
    $region42: #{tpu_custom_call.1} parent=5 // pred_check_branch
      %279 = sbr.rel (%p277) target = $region44
    $region43: #{tpu_custom_call.1} parent=5 // pred_region
      // Predicated region
      $region45: #{tpu_custom_call.1} parent=43 // pred_check
        %p280 = pneg %p35
      $region46: #{tpu_custom_call.1} parent=43 // pred_check_branch
        %282 = sbr.rel (%p280) target = $region48
      $region47: #{tpu_custom_call.1} parent=43 // pred_region
        %p283 = scmp.lt.s32.totalorder %s15, 1
        %s284 = scalar_select %p283, %s15, 1
        %s285 = scalar_lea.vmem %s0, %s284
      $region48: #{tpu_custom_call.1} parent=43 // pred_fallthru
        _
      // Predicated region
      $region49: #{tpu_custom_call.1} parent=43 // pred_check
        %p286 = pneg %p61
      $region50: #{tpu_custom_call.1} parent=43 // pred_check_branch
        %288 = sbr.rel (%p286) target = $region52
      $region51: #{tpu_custom_call.1} parent=43 // pred_region
        %p289 = scmp.lt.s32.totalorder %s15, 1
        %s290 = scalar_select %p289, %s15, 1
        %s291 = smul.addr %s290, 4
        %s292 = scalar_lea.vmem %s1, %s291
      $region52: #{tpu_custom_call.1} parent=43 // pred_fallthru
        _
    $region44: #{tpu_custom_call.1} parent=5 // pred_fallthru
      _
    %p293 = scmp.le.s32.totalorder 1, %s15
    %p294 = scmp.lt.s32.totalorder %s15, 3
    %p295 = pnand %p293, %p294
    %p296 = pneg %p295
    // Predicated region
    $region53: #{tpu_custom_call.1} parent=5 // pred_check
      _
    $region54: #{tpu_custom_call.1} parent=5 // pred_check_branch
      %298 = sbr.rel (%p295) target = $region56
    $region55: #{tpu_custom_call.1} parent=5 // pred_region
      %s299 = ssub.s32 %s15, 1
      %p300 = scmp.lt.s32.totalorder %s20, 1
      %s301 = scalar_select %p300, %s20, 1
      %s302 = scalar_lea.vmem %s0, %s301
      %p303 = pneg %p41
      %p304 = pneg %p38
      %p305 = scmp.lt.s32.totalorder %s20, 1
      %s306 = scalar_select %p305, %s20, 1
      %s307 = smul.addr %s306, 4
      %s308 = scalar_lea.vmem %s1, %s307
      %p309 = pneg %p67
      %p310 = pneg %p64
      %p311 = pneg %p88
      %p312 = pneg %p85
      %p313 = pneg %p109
      %p314 = pneg %p106
      %p315 = pneg %p130
      %p316 = pneg %p127
      %p317 = pneg %p151
      %p318 = pneg %p148
      %p319 = pneg %p172
      %p320 = pneg %p169
      %p321 = pneg %p193
      %p322 = pneg %p190
      %p323 = pneg %p214
      %p324 = pneg %p211
      %p325 = pneg %p240
      %p326 = pneg %p237
      %p327 = scmp.lt.s32.totalorder %s20, 1
      %s328 = scalar_select %p327, %s20, 1
      %s329 = smul.addr %s328, 8
      %s330 = scalar_lea.vmem %s9, %s329
      %p331 = scmp.lt.s32.totalorder %s20, 1
      %s332 = scalar_select %p331, %s20, 1
      %s333 = scalar_lea.vmem %s0, %s332
      %p334 = scmp.lt.s32.totalorder %s20, 1
      %s335 = scalar_select %p334, %s20, 1
      %s336 = smul.addr %s335, 4
      %s337 = scalar_lea.vmem %s1, %s336
      %p338 = scmp.lt.s32.totalorder %s20, 1
      %s339 = scalar_select %p338, %s20, 1
      %s340 = smul.addr %s339, 8
      %s341 = scalar_lea.vmem %s9, %s340
      %v342 = vld [vmem:[%s333] sm:$0x1]
      %v343 = vld [vmem:[%s4] sm:$0x1]
      %v344 = vadd.f32 %v342, %v343
      %vm345 = vcmask 253952
      %346 = vst.msk [vmem:[#allocation2] sm:$0x1] %vm345, %v344
      %v347 = vld [vmem:[%s337] sm:$0xf]
      %v348 = vld [vmem:[%s2] sm:$0x3f]
      %v349 = vld [vmem:[%s3] sm:$0x1]
      %v351 = vlaneseq
      %v352 = vshrl.u32 %v351, 7
      %v353 = vsub.s32 0, %v352
      %v354 = vrot.slane %v349, %v353
      %vm356 = vcmask 48128
      %v358 = vsel %vm356, %v347, 0
      %vm360 = vcmask 1045504
      %v362 = vsel %vm360, %v348, 0
      %364 = vmatprep.subr.mxu0 0.0
      %365 = vmatpush1.msra.mxu0 %v362
      %366 = vmatprep.subr.mxu0 0.0
      %367 = vmatpush1.msra.mxu0 0.0
      %368 = vmatprep.subr.mxu0 0.0
      %369 = vmatpush1.msra.mxu0 0.0
      %370 = vmatprep.subr.mxu0 0.0
      %371 = vmatpush1.msra.mxu0 0.0
      %372 = vmatprep.subr.mxu0 0.0
      %373 = vmatpush1.msra.mxu0 0.0
      %374 = vmatprep.subr.mxu0 0.0
      %375 = vmatpush1.msra.mxu0 0.0
      %376 = vmatprep.subr.mxu0 0.0
      %377 = vmatpush1.msra.mxu0 0.0
      %378 = vmatprep.subr.mxu0 0.0
      %379 = vmatpush1.msra.mxu0 0.0
      %380 = vmatprep.subr.mxu0 0.0
      %381 = vmatpush1.msra.mxu0 0.0
      %382 = vmatprep.subr.mxu0 0.0
      %383 = vmatpush1.msra.mxu0 0.0
      %384 = vmatprep.subr.mxu0 0.0
      %385 = vmatpush1.msra.mxu0 0.0
      %386 = vmatprep.subr.mxu0 0.0
      %387 = vmatpush1.msra.mxu0 0.0
      %388 = vmatprep.subr.mxu0 0.0
      %389 = vmatpush1.msra.mxu0 0.0
      %390 = vmatprep.subr.mxu0 0.0
      %391 = vmatpush1.msra.mxu0 0.0
      %392 = vmatprep.subr.mxu0 0.0
      %393 = vmatpush1.msra.mxu0 0.0
      %394 = vmatprep.subr.mxu0 0.0
      %395 = vmatpush1.msra.mxu0 0.0
      %396 = vmatprep.subr.mxu0 0.0
      %397 = vmatpush1.msra.mxu0 0.0
      %398 = vmatprep.subr.mxu0 0.0
      %399 = vmatpush1.msra.mxu0 0.0
      %400 = vmatprep.subr.mxu0 0.0
      %401 = vmatpush1.msra.mxu0 0.0
      %402 = vmatprep.subr.mxu0 0.0
      %403 = vmatpush1.msra.mxu0 0.0
      %404 = vmatprep.subr.mxu0 0.0
      %405 = vmatpush1.msra.mxu0 0.0
      %406 = vmatprep.subr.mxu0 0.0
      %407 = vmatpush1.msra.mxu0 0.0
      %408 = vmatprep.subr.mxu0 0.0
      %409 = vmatpush1.msra.mxu0 0.0
      %410 = vmatprep.subr.mxu0 0.0
      %411 = vmatpush1.msra.mxu0 0.0
      %412 = vmatprep.subr.mxu0 0.0
      %413 = vmatpush1.msra.mxu0 0.0
      %414 = vmatprep.subr.mxu0 0.0
      %415 = vmatpush1.msra.mxu0 0.0
      %416 = vmatprep.subr.mxu0 0.0
      %417 = vmatpush1.msra.mxu0 0.0
      %418 = vmatprep.subr.mxu0 0.0
      %419 = vmatpush1.msra.mxu0 0.0
      %420 = vmatprep.subr.mxu0 0.0
      %421 = vmatpush1.msra.mxu0 0.0
      %422 = vmatprep.subr.mxu0 0.0
      %423 = vmatpush1.msra.mxu0 0.0
      %424 = vmatprep.subr.mxu0 0.0
      %425 = vmatpush1.msra.mxu0 0.0
      %426 = vmatprep.subr.mxu0 0.0
      %427 = vmatpush1.msra.mxu0 0.0
      %428 = vmatprep.mubr.f32.mxu0 0.0
      %429 = vmatmul.mubr.f32.gmra.mrb[0].mxu0 %v358
      %v430 = vpop.f32.mrb[0].mxu0
      %v431 = vadd.f32 %v354, %v430
      %v432 = vpop.f32.mrb[0].mxu0
      %433 = vdwg.mxu0
      %v434 = vld [vmem:[%s4 + $0x1] sm:$0xf]
      %v435 = vadd.f32 %v431, %v434
      %vm436 = vcmask 257024
      %437 = vst.msk [vmem:[#allocation2 + $0x1] sm:$0xf] %vm436, %v435
      %v438 = vld [vmem:[#allocation2] sm:$0x1f]
      %v439 = vld [vmem:[%s5] sm:$0xff]
      %v440 = vld [vmem:[%s5 + $0x8] sm:$0xff]
      %v441 = vld [vmem:[%s5 + $0x10] sm:$0xff]
      %v442 = vld [vmem:[%s5 + $0x18] sm:$0xff]
      %v443 = vld [vmem:[%s6] sm:$0x1]
      %v445 = vlaneseq
      %v446 = vshrl.u32 %v445, 7
      %v447 = vsub.s32 0, %v446
      %v448 = vrot.slane %v443, %v447
      %vm450 = vcmask 261120
      %v452 = vsel %vm450, %v438, 0
      %454 = vmatprep.subr.mxu0 0.0
      %455 = vmatpush1.msra.mxu0 %v439
      %456 = vmatprep.subr.mxu0 0.0
      %457 = vmatpush1.msra.mxu0 %v440
      %458 = vmatprep.subr.mxu0 0.0
      %459 = vmatpush1.msra.mxu0 %v441
      %460 = vmatprep.subr.mxu0 0.0
      %461 = vmatpush1.msra.mxu0 %v442
      %462 = vmatprep.subr.mxu0 0.0
      %463 = vmatpush1.msra.mxu0 0.0
      %464 = vmatprep.subr.mxu0 0.0
      %465 = vmatpush1.msra.mxu0 0.0
      %466 = vmatprep.subr.mxu0 0.0
      %467 = vmatpush1.msra.mxu0 0.0
      %468 = vmatprep.subr.mxu0 0.0
      %469 = vmatpush1.msra.mxu0 0.0
      %470 = vmatprep.subr.mxu0 0.0
      %471 = vmatpush1.msra.mxu0 0.0
      %472 = vmatprep.subr.mxu0 0.0
      %473 = vmatpush1.msra.mxu0 0.0
      %474 = vmatprep.subr.mxu0 0.0
      %475 = vmatpush1.msra.mxu0 0.0
      %476 = vmatprep.subr.mxu0 0.0
      %477 = vmatpush1.msra.mxu0 0.0
      %478 = vmatprep.subr.mxu0 0.0
      %479 = vmatpush1.msra.mxu0 0.0
      %480 = vmatprep.subr.mxu0 0.0
      %481 = vmatpush1.msra.mxu0 0.0
      %482 = vmatprep.subr.mxu0 0.0
      %483 = vmatpush1.msra.mxu0 0.0
      %484 = vmatprep.subr.mxu0 0.0
      %485 = vmatpush1.msra.mxu0 0.0
      %486 = vmatprep.subr.mxu0 0.0
      %487 = vmatpush1.msra.mxu0 0.0
      %488 = vmatprep.subr.mxu0 0.0
      %489 = vmatpush1.msra.mxu0 0.0
      %490 = vmatprep.subr.mxu0 0.0
      %491 = vmatpush1.msra.mxu0 0.0
      %492 = vmatprep.subr.mxu0 0.0
      %493 = vmatpush1.msra.mxu0 0.0
      %494 = vmatprep.subr.mxu0 0.0
      %495 = vmatpush1.msra.mxu0 0.0
      %496 = vmatprep.subr.mxu0 0.0
      %497 = vmatpush1.msra.mxu0 0.0
      %498 = vmatprep.subr.mxu0 0.0
      %499 = vmatpush1.msra.mxu0 0.0
      %500 = vmatprep.subr.mxu0 0.0
      %501 = vmatpush1.msra.mxu0 0.0
      %502 = vmatprep.subr.mxu0 0.0
      %503 = vmatpush1.msra.mxu0 0.0
      %504 = vmatprep.subr.mxu0 0.0
      %505 = vmatpush1.msra.mxu0 0.0
      %506 = vmatprep.subr.mxu0 0.0
      %507 = vmatpush1.msra.mxu0 0.0
      %508 = vmatprep.subr.mxu0 0.0
      %509 = vmatpush1.msra.mxu0 0.0
      %510 = vmatprep.subr.mxu0 0.0
      %511 = vmatpush1.msra.mxu0 0.0
      %512 = vmatprep.subr.mxu0 0.0
      %513 = vmatpush1.msra.mxu0 0.0
      %514 = vmatprep.subr.mxu0 0.0
      %515 = vmatpush1.msra.mxu0 0.0
      %516 = vmatprep.subr.mxu0 0.0
      %517 = vmatpush1.msra.mxu0 0.0
      %518 = vmatprep.mubr.f32.mxu0 0.0
      %519 = vmatmul.mubr.f32.gmra.mrb[0].mxu0 %v452
      %v520 = vpop.f32.mrb[0].mxu0
      %v521 = vadd.f32 %v448, %v520
      %v522 = vpop.f32.mrb[0].mxu0
      %523 = vdwg.mxu0
      %v524 = vmax.f32 %v521, 0.0
      %v525 = vand.u32 2147483647, %v521
      %v526 = vsub.f32 0.0, %v525
      %v527 = vmul.f32 %v526, 1.442695
      %v528 = vpow.pop %v527
      %v529 = vadd.f32 %v528, 1.0
      %v530 = vlog2.pop %v529
      %v531 = vmul.f32 %v530, 0.6931472
      %v532 = vadd.f32 %v524, %v531
      %v533 = vtanh.pop %v532
      %v534 = vmul.f32 %v521, %v533
      %v535 = vld [vmem:[%s7] sm:$0xff]
      %v536 = vld [vmem:[%s7 + $0x8] sm:$0xff]
      %v537 = vld [vmem:[%s7 + $0x10] sm:$0xff]
      %v538 = vld [vmem:[%s7 + $0x18] sm:$0xff]
      %v539 = vld [vmem:[%s7 + $0x20] sm:$0xff]
      %v540 = vld [vmem:[%s7 + $0x28] sm:$0xff]
      %v541 = vld [vmem:[%s7 + $0x30] sm:$0xff]
      %v542 = vld [vmem:[%s7 + $0x38] sm:$0xff]
      %v543 = vld [vmem:[%s7 + $0x40] sm:$0xff]
      %v544 = vld [vmem:[%s7 + $0x48] sm:$0xff]
      %v545 = vld [vmem:[%s7 + $0x50] sm:$0xff]
      %v546 = vld [vmem:[%s7 + $0x58] sm:$0xff]
      %v547 = vld [vmem:[%s7 + $0x60] sm:$0xff]
      %v548 = vld [vmem:[%s7 + $0x68] sm:$0xff]
      %v549 = vld [vmem:[%s7 + $0x70] sm:$0xff]
      %v550 = vld [vmem:[%s7 + $0x78] sm:$0xff]
      %v551 = vld [vmem:[%s8] sm:$0x1]
      %v553 = vlaneseq
      %v554 = vshrl.u32 %v553, 7
      %v555 = vsub.s32 0, %v554
      %v556 = vrot.slane %v551, %v555
      %558 = vmatprep.subr.mxu0 0.0
      %559 = vmatpush1.msra.mxu0 %v535
      %560 = vmatprep.subr.mxu0 0.0
      %561 = vmatpush1.msra.mxu0 %v536
      %562 = vmatprep.subr.mxu0 0.0
      %563 = vmatpush1.msra.mxu0 %v537
      %564 = vmatprep.subr.mxu0 0.0
      %565 = vmatpush1.msra.mxu0 %v538
      %566 = vmatprep.subr.mxu0 0.0
      %567 = vmatpush1.msra.mxu0 %v539
      %568 = vmatprep.subr.mxu0 0.0
      %569 = vmatpush1.msra.mxu0 %v540
      %570 = vmatprep.subr.mxu0 0.0
      %571 = vmatpush1.msra.mxu0 %v541
      %572 = vmatprep.subr.mxu0 0.0
      %573 = vmatpush1.msra.mxu0 %v542
      %574 = vmatprep.subr.mxu0 0.0
      %575 = vmatpush1.msra.mxu0 %v543
      %576 = vmatprep.subr.mxu0 0.0
      %577 = vmatpush1.msra.mxu0 %v544
      %578 = vmatprep.subr.mxu0 0.0
      %579 = vmatpush1.msra.mxu0 %v545
      %580 = vmatprep.subr.mxu0 0.0
      %581 = vmatpush1.msra.mxu0 %v546
      %582 = vmatprep.subr.mxu0 0.0
      %583 = vmatpush1.msra.mxu0 %v547
      %584 = vmatprep.subr.mxu0 0.0
      %585 = vmatpush1.msra.mxu0 %v548
      %586 = vmatprep.subr.mxu0 0.0
      %587 = vmatpush1.msra.mxu0 %v549
      %588 = vmatprep.subr.mxu0 0.0
      %589 = vmatpush1.msra.mxu0 %v550
      %590 = vmatprep.subr.mxu0 0.0
      %591 = vmatpush1.msra.mxu0 0.0
      %592 = vmatprep.subr.mxu0 0.0
      %593 = vmatpush1.msra.mxu0 0.0
      %594 = vmatprep.subr.mxu0 0.0
      %595 = vmatpush1.msra.mxu0 0.0
      %596 = vmatprep.subr.mxu0 0.0
      %597 = vmatpush1.msra.mxu0 0.0
      %598 = vmatprep.subr.mxu0 0.0
      %599 = vmatpush1.msra.mxu0 0.0
      %600 = vmatprep.subr.mxu0 0.0
      %601 = vmatpush1.msra.mxu0 0.0
      %602 = vmatprep.subr.mxu0 0.0
      %603 = vmatpush1.msra.mxu0 0.0
      %604 = vmatprep.subr.mxu0 0.0
      %605 = vmatpush1.msra.mxu0 0.0
      %606 = vmatprep.subr.mxu0 0.0
      %607 = vmatpush1.msra.mxu0 0.0
      %608 = vmatprep.subr.mxu0 0.0
      %609 = vmatpush1.msra.mxu0 0.0
      %610 = vmatprep.subr.mxu0 0.0
      %611 = vmatpush1.msra.mxu0 0.0
      %612 = vmatprep.subr.mxu0 0.0
      %613 = vmatpush1.msra.mxu0 0.0
      %614 = vmatprep.subr.mxu0 0.0
      %615 = vmatpush1.msra.mxu0 0.0
      %616 = vmatprep.subr.mxu0 0.0
      %617 = vmatpush1.msra.mxu0 0.0
      %618 = vmatprep.subr.mxu0 0.0
      %619 = vmatpush1.msra.mxu0 0.0
      %620 = vmatprep.subr.mxu0 0.0
      %621 = vmatpush1.msra.mxu0 0.0
      %622 = vmatprep.mubr.f32.mxu0 0.0
      %623 = vmatmul.mubr.f32.gmra.mrb[0].mxu0 %v534
      %v624 = vpop.f32.mrb[0].mxu0
      %v625 = vadd.f32 %v556, %v624
      %v626 = vpop.f32.mrb[0].mxu0
      %627 = vdwg.mxu0
      %vm628 = vcmask 258048
      %629 = vst.msk [vmem:[%s341] sm:$0x1f] %vm628, %v625
      %p630 = scmp.lt.s32.totalorder %s20, 1
      %s631 = scalar_select %p630, %s20, 1
      %s632 = smul.addr %s631, 8
      %s633 = scalar_lea.vmem %s9, %s632
      // Predicated region
      $region57: #{tpu_custom_call.1} parent=55 // pred_check
        %p634 = pneg %p237
      $region58: #{tpu_custom_call.1} parent=55 // pred_check_branch
        %636 = sbr.rel (%p634) target = $region60
      $region59: #{tpu_custom_call.1} parent=55 // pred_region
        _
      $region60: #{tpu_custom_call.1} parent=55 // pred_fallthru
        _
    $region56: #{tpu_custom_call.1} parent=5 // pred_fallthru
      _
    %p637 = scmp.le.s32.totalorder 2, %s15
    // Predicated region
    $region61: #{tpu_custom_call.1} parent=5 // pred_check
      %p638 = pneg %p637
    $region62: #{tpu_custom_call.1} parent=5 // pred_check_branch
      %640 = sbr.rel (%p638) target = $region64
    $region63: #{tpu_custom_call.1} parent=5 // pred_region
      %s641 = ssub.s32 %s15, 2
      // Predicated region
      $region65: #{tpu_custom_call.1} parent=63 // pred_check
        %p642 = pneg %p243
      $region66: #{tpu_custom_call.1} parent=63 // pred_check_branch
        %644 = sbr.rel (%p642) target = $region68
      $region67: #{tpu_custom_call.1} parent=63 // pred_region
        %p645 = scmp.lt.s32.totalorder %s21, 1
        %s646 = scalar_select %p645, %s21, 1
        %s647 = smul.addr %s646, 8
        %s648 = scalar_lea.vmem %s9, %s647
      $region68: #{tpu_custom_call.1} parent=63 // pred_fallthru
        _
    $region64: #{tpu_custom_call.1} parent=5 // pred_fallthru
      _
  $region6: #{tpu_custom_call.1} parent=0 // loop_footer
    %s19 = sadd.s32 1, %s15
  $region7: #{tpu_custom_call.1} parent=0 // loop_footer_branch
    %14 = sbr.rel target = $region3
  $region8: #{tpu_custom_call.1} parent=0 // loop_exit
    _

</llo_original>
